<compile_context>
chip_gen: v7x
topology: tpu7x:2x2x1
jax: 0.10.0
libtpu: 0.0.40
codegen_flags: <defaults>
</compile_context>

<pallas_src>
import math

import jax
import jax.numpy as jnp
from jax.experimental import pallas as pl
from jax.experimental.pallas import tpu as pltpu

NOISE_SIZE = 3
SAMPLE_SIZE = 2
OUTPUT_SIZE = 1
HIDDEN_SIZE = 128
FUSED_K = 8        # noise_size + sample_size (=5) zero-padded up to 8
OUT_ROWS = 8       # output rows padded up to one sublane tile (row 0 is real)


def _leaky_relu(x, slope=0.2):
    return jnp.where(x >= 0, x, slope * x)


def mine_kernel(xin_ref, w1_ref, b1_ref, w2_ref, b2_ref, w3_ref, b3_ref,
                out_ref):
    # All activations are hidden-major: (features, batch_tile).
    # fc1 (fused noise+sample linear) + leaky_relu(0.2)
    x = _leaky_relu(
        jnp.dot(w1_ref[...], xin_ref[...],
                preferred_element_type=jnp.float32) + b1_ref[...])
    # fc2 + leaky_relu(0.2)
    x = _leaky_relu(
        jnp.dot(w2_ref[...], x,
                preferred_element_type=jnp.float32) + b2_ref[...])
    # fc3 + leaky_relu(0.2); rows 1..7 of w3/b3 are zero -> those output rows
    # are leaky_relu(0) == 0 and get sliced off in the wrapper.
    x = _leaky_relu(
        jnp.dot(w3_ref[...], x,
                preferred_element_type=jnp.float32) + b3_ref[...])
    out_ref[...] = x.astype(out_ref.dtype)


def mine_forward(noise, sample, params, *, tile_b=2048):
    """noise: (B, 3) f32, sample: (B, 2) f32 -> (B, 1) f32."""
    B = noise.shape[0]

    # Tile must be a multiple of 128 (lane width); don't over-pad tiny batches.
    b_ceil = ((B + 127) // 128) * 128
    tile = max(128, min((tile_b // 128) * 128, b_ceil))
    num_tiles = pl.cdiv(B, tile)
    b_pad = num_tiles * tile

    # Fuse the two fc1 inputs, transpose to hidden-major, pad K->8 and B->b_pad.
    fused = jnp.concatenate([noise, sample], axis=1)                 # (B, 5)
    fused_t = jnp.pad(fused.T.astype(jnp.float32),
                      ((0, FUSED_K - fused.shape[1]), (0, b_pad - B)))  # (8, b_pad)

    resident = lambda i: (0, 0)   # weights/biases: same block every grid step
    grid_spec = pltpu.PrefetchScalarGridSpec(
        num_scalar_prefetch=0,
        grid=(num_tiles,),
        in_specs=[
            pl.BlockSpec((FUSED_K, tile), lambda i: (0, i)),           # x^T
            pl.BlockSpec((HIDDEN_SIZE, FUSED_K), resident),            # W1^T
            pl.BlockSpec((HIDDEN_SIZE, 1), resident),                  # b1
            pl.BlockSpec((HIDDEN_SIZE, HIDDEN_SIZE), resident),        # W2^T
            pl.BlockSpec((HIDDEN_SIZE, 1), resident),                  # b2
            pl.BlockSpec((OUT_ROWS, HIDDEN_SIZE), resident),           # W3^T pad
            pl.BlockSpec((OUT_ROWS, 1), resident),                     # b3 pad
        ],
        out_specs=pl.BlockSpec((OUT_ROWS, tile), lambda i: (0, i)),
    )

    out = pl.pallas_call(
        mine_kernel,
        out_shape=jax.ShapeDtypeStruct((OUT_ROWS, b_pad), jnp.float32),
        grid_spec=grid_spec,
        compiler_params=pltpu.CompilerParams(
            # batch tiles are independent -> shard across v7x's two TCs
            dimension_semantics=("parallel",),
        ),
    )(fused_t,
      params["w1_t"], params["b1_t"],
      params["w2_t"], params["b2_t"],
      params["w3_t"], params["b3_t"])

    # row 0 is the real fc3 output; rows 1..7 / cols B..b_pad are padding.
    return out[0, :B][:, None]


def init_params(key):
    """Deterministic init mirroring nn.init.kaiming_normal_ (fan_in, relu gain)
    on the (out, in) PyTorch weights.  Reference params use (in, out) layout;
    kernel params ("*_t") are the transposed / zero-padded, hidden-major
    versions consumed by the Pallas kernel."""
    k1, k2, k3, k4 = jax.random.split(key, 4)

    def kaiming(k, out_f, in_f):
        std = math.sqrt(2.0 / in_f)
        # sample in PyTorch's (out, in) layout, then transpose to (in, out)
        w = std * jax.random.normal(k, (out_f, in_f), dtype=jnp.float32)
        return w.T

    w1n = kaiming(k1, HIDDEN_SIZE, NOISE_SIZE)    # (3, 128)
    w1s = kaiming(k2, HIDDEN_SIZE, SAMPLE_SIZE)   # (2, 128)
    w2 = kaiming(k3, HIDDEN_SIZE, HIDDEN_SIZE)    # (128, 128)
    w3 = kaiming(k4, OUTPUT_SIZE, HIDDEN_SIZE)    # (128, 1)
    b1 = jnp.zeros((HIDDEN_SIZE,), jnp.float32)
    b2 = jnp.zeros((HIDDEN_SIZE,), jnp.float32)
    b3 = jnp.zeros((OUTPUT_SIZE,), jnp.float32)

    # Kernel-layout (hidden-major) params.
    pad_cols = FUSED_K - NOISE_SIZE - SAMPLE_SIZE
    w1_t = jnp.concatenate(
        [w1n.T, w1s.T, jnp.zeros((HIDDEN_SIZE, pad_cols), jnp.float32)],
        axis=1)                                                   # (128, 8)
    w3_t = jnp.concatenate(
        [w3.T, jnp.zeros((OUT_ROWS - OUTPUT_SIZE, HIDDEN_SIZE), jnp.float32)],
        axis=0)                                                   # (8, 128)
    b3_t = jnp.concatenate(
        [b3, jnp.zeros((OUT_ROWS - OUTPUT_SIZE,), jnp.float32)])[:, None]  # (8, 1)

    return {
        # reference (batch-major, (in, out)) params
        "w1n": w1n, "w1s": w1s, "w2": w2, "w3": w3,
        "b1": b1, "b2": b2, "b3": b3,
        # kernel (hidden-major) params
        "w1_t": w1_t,                                  # (128, 8)
        "b1_t": b1[:, None],                           # (128, 1)
        "w2_t": w2.T,                                  # (128, 128)
        "b2_t": b2[:, None],                           # (128, 1)
        "w3_t": w3_t,                                  # (8, 128) rows 1..7 zero
        "b3_t": b3_t,                                  # (8, 1)   rows 1..7 zero
    }


def mine_reference(noise, sample, params):
    x = _leaky_relu(noise @ params["w1n"] + sample @ params["w1s"]
                    + params["b1"])
    x = _leaky_relu(x @ params["w2"] + params["b2"])
    x = _leaky_relu(x @ params["w3"] + params["b3"])
    return x


# TODO(synk): self.ma_et (EMA of e^T used by the MINE training loss) is
# training-time state, not part of the forward pass, so it is not modeled here.

if __name__ == "__main__":
    key = jax.random.PRNGKey(0)
    kp, kn, ks = jax.random.split(key, 3)

    params = init_params(kp)

    # Small demo batch.
    B = 8
    noise = jax.random.normal(kn, (B, NOISE_SIZE), dtype=jnp.float32)
    sample = jax.random.normal(ks, (B, SAMPLE_SIZE), dtype=jnp.float32)

    out = jax.block_until_ready(mine_forward(noise, sample, params))
    ref = mine_reference(noise, sample, params)
    assert out.shape == (B, OUTPUT_SIZE)
    assert jnp.allclose(out, ref, atol=1e-5, rtol=1e-5)

    # Also exercise a batch that is not a multiple of the tile / lane width.
    B2 = 200
    kn2, ks2 = jax.random.split(jax.random.PRNGKey(1))
    noise2 = jax.random.normal(kn2, (B2, NOISE_SIZE), dtype=jnp.float32)
    sample2 = jax.random.normal(ks2, (B2, SAMPLE_SIZE), dtype=jnp.float32)
    out2 = jax.block_until_ready(
        mine_forward(noise2, sample2, params, tile_b=128))
    ref2 = mine_reference(noise2, sample2, params)
    assert out2.shape == (B2, OUTPUT_SIZE)
    assert jnp.allclose(out2, ref2, atol=1e-5, rtol=1e-5)

    print("KERNEL_OK")
</pallas_src>

<mosaic_0001>
module attributes {stable_mosaic.version = 11 : i64} {
  func.func @mine_kernel(%arg0: i32, %arg1: memref<8x128xf32, #tpu.memory_space<vmem>>, %arg2: memref<128x8xf32, #tpu.memory_space<vmem>>, %arg3: memref<128x1xf32, #tpu.memory_space<vmem>>, %arg4: memref<128x128xf32, #tpu.memory_space<vmem>>, %arg5: memref<128x1xf32, #tpu.memory_space<vmem>>, %arg6: memref<8x128xf32, #tpu.memory_space<vmem>>, %arg7: memref<8x1xf32, #tpu.memory_space<vmem>>, %arg8: memref<8x128xf32, #tpu.memory_space<vmem>>) attributes {dimension_semantics = [#tpu.dimension_semantics<parallel>], iteration_bounds = array<i64: 1>, scalar_prefetch = 0 : i64, scratch_operands = 0 : i64, tpu.core_type = #tpu.core_type<tc>, window_params = [{transform_indices = @transform_0, window_bounds = array<i64: 8, 128>}, {pipeline_mode = #tpu.pipeline_mode<synchronous>, transform_indices = @transform_1, window_bounds = array<i64: 128, 8>}, {pipeline_mode = #tpu.pipeline_mode<synchronous>, transform_indices = @transform_2, window_bounds = array<i64: 128, 1>}, {pipeline_mode = #tpu.pipeline_mode<synchronous>, transform_indices = @transform_3, window_bounds = array<i64: 128, 128>}, {pipeline_mode = #tpu.pipeline_mode<synchronous>, transform_indices = @transform_4, window_bounds = array<i64: 128, 1>}, {pipeline_mode = #tpu.pipeline_mode<synchronous>, transform_indices = @transform_5, window_bounds = array<i64: 8, 128>}, {pipeline_mode = #tpu.pipeline_mode<synchronous>, transform_indices = @transform_6, window_bounds = array<i64: 8, 1>}, {transform_indices = @transform_7, window_bounds = array<i64: 8, 128>}]} {
    %c0 = arith.constant 0 : index
    %c0_0 = arith.constant 0 : index
    %0 = vector.load %arg2[%c0, %c0_0] : memref<128x8xf32, #tpu.memory_space<vmem>>, vector<128x8xf32>
    %c0_1 = arith.constant 0 : index
    %c0_2 = arith.constant 0 : index
    %1 = vector.load %arg1[%c0_1, %c0_2] : memref<8x128xf32, #tpu.memory_space<vmem>>, vector<8x128xf32>
    %cst = arith.constant dense<0.000000e+00> : vector<128x128xf32>
    %2 = tpu.matmul %0, %1, %cst {dimension_numbers = #tpu.dot_dimension_numbers<[1], [0], [0], [1], [0, 0, 1, 1], [], []>} : vector<128x8xf32>, vector<8x128xf32>, vector<128x128xf32> -> vector<128x128xf32>
    %c0_3 = arith.constant 0 : index
    %c0_4 = arith.constant 0 : index
    %3 = vector.load %arg3[%c0_3, %c0_4] : memref<128x1xf32, #tpu.memory_space<vmem>>, vector<128x1xf32>
    %4 = vector.broadcast %3 : vector<128x1xf32> to vector<128x128xf32>
    %5 = arith.addf %2, %4 : vector<128x128xf32>
    %cst_5 = arith.constant 0.000000e+00 : f32
    %6 = vector.broadcast %cst_5 : f32 to vector<128x128xf32>
    %7 = arith.cmpf oge, %5, %6 : vector<128x128xf32>
    %cst_6 = arith.constant 2.000000e-01 : f32
    %8 = vector.broadcast %cst_6 : f32 to vector<128x128xf32>
    %9 = arith.mulf %8, %5 : vector<128x128xf32>
    %10 = arith.select %7, %5, %9 : vector<128x128xi1>, vector<128x128xf32>
    %c0_7 = arith.constant 0 : index
    %c0_8 = arith.constant 0 : index
    %11 = vector.load %arg4[%c0_7, %c0_8] : memref<128x128xf32, #tpu.memory_space<vmem>>, vector<128x128xf32>
    %cst_9 = arith.constant dense<0.000000e+00> : vector<128x128xf32>
    %12 = tpu.matmul %11, %10, %cst_9 {dimension_numbers = #tpu.dot_dimension_numbers<[1], [0], [0], [1], [0, 0, 1, 1], [], []>} : vector<128x128xf32>, vector<128x128xf32>, vector<128x128xf32> -> vector<128x128xf32>
    %c0_10 = arith.constant 0 : index
    %c0_11 = arith.constant 0 : index
    %13 = vector.load %arg5[%c0_10, %c0_11] : memref<128x1xf32, #tpu.memory_space<vmem>>, vector<128x1xf32>
    %14 = vector.broadcast %13 : vector<128x1xf32> to vector<128x128xf32>
    %15 = arith.addf %12, %14 : vector<128x128xf32>
    %cst_12 = arith.constant 0.000000e+00 : f32
    %16 = vector.broadcast %cst_12 : f32 to vector<128x128xf32>
    %17 = arith.cmpf oge, %15, %16 : vector<128x128xf32>
    %cst_13 = arith.constant 2.000000e-01 : f32
    %18 = vector.broadcast %cst_13 : f32 to vector<128x128xf32>
    %19 = arith.mulf %18, %15 : vector<128x128xf32>
    %20 = arith.select %17, %15, %19 : vector<128x128xi1>, vector<128x128xf32>
    %c0_14 = arith.constant 0 : index
    %c0_15 = arith.constant 0 : index
    %21 = vector.load %arg6[%c0_14, %c0_15] : memref<8x128xf32, #tpu.memory_space<vmem>>, vector<8x128xf32>
    %cst_16 = arith.constant dense<0.000000e+00> : vector<8x128xf32>
    %22 = tpu.matmul %21, %20, %cst_16 {dimension_numbers = #tpu.dot_dimension_numbers<[1], [0], [0], [1], [0, 0, 1, 1], [], []>} : vector<8x128xf32>, vector<128x128xf32>, vector<8x128xf32> -> vector<8x128xf32>
    %c0_17 = arith.constant 0 : index
    %c0_18 = arith.constant 0 : index
    %23 = vector.load %arg7[%c0_17, %c0_18] : memref<8x1xf32, #tpu.memory_space<vmem>>, vector<8x1xf32>
    %24 = vector.broadcast %23 : vector<8x1xf32> to vector<8x128xf32>
    %25 = arith.addf %22, %24 : vector<8x128xf32>
    %cst_19 = arith.constant 0.000000e+00 : f32
    %26 = vector.broadcast %cst_19 : f32 to vector<8x128xf32>
    %27 = arith.cmpf oge, %25, %26 : vector<8x128xf32>
    %cst_20 = arith.constant 2.000000e-01 : f32
    %28 = vector.broadcast %cst_20 : f32 to vector<8x128xf32>
    %29 = arith.mulf %28, %25 : vector<8x128xf32>
    %30 = arith.select %27, %25, %29 : vector<8x128xi1>, vector<8x128xf32>
    %c0_21 = arith.constant 0 : index
    %c0_22 = arith.constant 0 : index
    %31 = vector.load %arg8[%c0_21, %c0_22] : memref<8x128xf32, #tpu.memory_space<vmem>>, vector<8x128xf32>
    tpu.vector_store %arg8[%c0_21, %c0_22], %30 {strides = array<i32>} : memref<8x128xf32, #tpu.memory_space<vmem>>, vector<8x128xf32>,
    return
  }
  func.func @transform_0(%arg0: i32) -> (i32, i32) {
    %c0_i32 = arith.constant 0 : i32
    %c0_i32_0 = arith.constant 0 : i32
    return %c0_i32, %arg0 : i32, i32
  }
  func.func @transform_1(%arg0: i32) -> (i32, i32) {
    %c0_i32 = arith.constant 0 : i32
    %c0_i32_0 = arith.constant 0 : i32
    %c0_i32_1 = arith.constant 0 : i32
    return %c0_i32, %c0_i32_0 : i32, i32
  }
  func.func @transform_2(%arg0: i32) -> (i32, i32) {
    %c0_i32 = arith.constant 0 : i32
    %c0_i32_0 = arith.constant 0 : i32
    %c0_i32_1 = arith.constant 0 : i32
    return %c0_i32, %c0_i32_0 : i32, i32
  }
  func.func @transform_3(%arg0: i32) -> (i32, i32) {
    %c0_i32 = arith.constant 0 : i32
    %c0_i32_0 = arith.constant 0 : i32
    %c0_i32_1 = arith.constant 0 : i32
    return %c0_i32, %c0_i32_0 : i32, i32
  }
  func.func @transform_4(%arg0: i32) -> (i32, i32) {
    %c0_i32 = arith.constant 0 : i32
    %c0_i32_0 = arith.constant 0 : i32
    %c0_i32_1 = arith.constant 0 : i32
    return %c0_i32, %c0_i32_0 : i32, i32
  }
  func.func @transform_5(%arg0: i32) -> (i32, i32) {
    %c0_i32 = arith.constant 0 : i32
    %c0_i32_0 = arith.constant 0 : i32
    %c0_i32_1 = arith.constant 0 : i32
    return %c0_i32, %c0_i32_0 : i32, i32
  }
  func.func @transform_6(%arg0: i32) -> (i32, i32) {
    %c0_i32 = arith.constant 0 : i32
    %c0_i32_0 = arith.constant 0 : i32
    %c0_i32_1 = arith.constant 0 : i32
    return %c0_i32, %c0_i32_0 : i32, i32
  }
  func.func @transform_7(%arg0: i32) -> (i32, i32) {
    %c0_i32 = arith.constant 0 : i32
    %c0_i32_0 = arith.constant 0 : i32
    return %c0_i32, %arg0 : i32, i32
  }
}

</mosaic_0001>

<llo_original>
// kernel: tpu_custom_call.1
$region0: #{tpu_custom_call.1}
  #allocation0 [shape = 'u32[]', space=smem, size = 0x4, offset = 0x4, fixed_abs, tag = 'smem constant byte address 0x4 - core index']
  #allocation1 [shape = 'u32[144,128]{1,0:T(1,128)}', space=vmem, size = 0x12000, scoped, tag = 'internal scratch']
  %s0 = inlined_call_operand.vmem [shape: f32[8,128], index: 0, kind: input, shape index: {}]
  %s1 = inlined_call_operand.vmem [shape: f32[128,8], index: 1, kind: input, shape index: {}]
  %s2 = inlined_call_operand.vmem [shape: f32[128,1], index: 2, kind: input, shape index: {}]
  %s3 = inlined_call_operand.vmem [shape: f32[128,128], index: 3, kind: input, shape index: {}]
  %s4 = inlined_call_operand.vmem [shape: f32[128,1], index: 4, kind: input, shape index: {}]
  %s5 = inlined_call_operand.vmem [shape: f32[8,128], index: 5, kind: input, shape index: {}]
  %s6 = inlined_call_operand.vmem [shape: f32[8,1], index: 6, kind: input, shape index: {}]
  %s7 = inlined_call_operand.hbm [shape: f32[8,128], index: 7, kind: output, shape index: {}]
  %s8 = sld [smem:[#allocation0]]
  $region38: #{tpu_custom_call.1} parent=0
    _
  %s10 = ssub.s32 1, %s8
  %s11 = scalar_select 0, %s10, %s8
  $region1: #{tpu_custom_call.1} parent=0
    #allocation2 [shape = 'u8[4096]{0}', space=vmem, size = 0x1000, scoped, tag = 'output window, operand 0, single buffered']
    #allocation3 [shape = 's32[1]{0}', space=sflag, size = 0x4, scoped, tag = 'scoped memory for tpu_custom_call.1']
    %12 = vsyncpa [#allocation3], 0
    // Predicated region
    $region2: #{tpu_custom_call.1} parent=1 // pred_check
      _
    $region3: #{tpu_custom_call.1} parent=1 // pred_check_branch
      %14 = sbr.rel (0) target = $region5
    $region4: #{tpu_custom_call.1} parent=1 // pred_region
      _
    $region5: #{tpu_custom_call.1} parent=1 // pred_fallthru
      _
    // Predicated region
    $region6: #{tpu_custom_call.1} parent=1 // pred_check
      _
    $region7: #{tpu_custom_call.1} parent=1 // pred_check_branch
      %16 = sbr.rel (0) target = $region9
    $region8: #{tpu_custom_call.1} parent=1 // pred_region
      _
    $region9: #{tpu_custom_call.1} parent=1 // pred_fallthru
      _
    // Predicated region
    $region10: #{tpu_custom_call.1} parent=1 // pred_check
      _
    $region11: #{tpu_custom_call.1} parent=1 // pred_check_branch
      %18 = sbr.rel (0) target = $region13
    $region12: #{tpu_custom_call.1} parent=1 // pred_region
      _
    $region13: #{tpu_custom_call.1} parent=1 // pred_fallthru
      _
    // Predicated region
    $region14: #{tpu_custom_call.1} parent=1 // pred_check
      _
    $region15: #{tpu_custom_call.1} parent=1 // pred_check_branch
      %20 = sbr.rel (0) target = $region17
    $region16: #{tpu_custom_call.1} parent=1 // pred_region
      _
    $region17: #{tpu_custom_call.1} parent=1 // pred_fallthru
      _
    // Predicated region
    $region18: #{tpu_custom_call.1} parent=1 // pred_check
      _
    $region19: #{tpu_custom_call.1} parent=1 // pred_check_branch
      %22 = sbr.rel (0) target = $region21
    $region20: #{tpu_custom_call.1} parent=1 // pred_region
      _
    $region21: #{tpu_custom_call.1} parent=1 // pred_fallthru
      _
    // Predicated region
    $region22: #{tpu_custom_call.1} parent=1 // pred_check
      _
    $region23: #{tpu_custom_call.1} parent=1 // pred_check_branch
      %24 = sbr.rel (0) target = $region25
    $region24: #{tpu_custom_call.1} parent=1 // pred_region
      _
    $region25: #{tpu_custom_call.1} parent=1 // pred_fallthru
      _
    // Predicated region
    $region26: #{tpu_custom_call.1} parent=1 // pred_check
      _
    $region27: #{tpu_custom_call.1} parent=1 // pred_check_branch
      %26 = sbr.rel (0) target = $region29
    $region28: #{tpu_custom_call.1} parent=1 // pred_region
      _
    $region29: #{tpu_custom_call.1} parent=1 // pred_fallthru
      _
    %v27 = vld [vmem:[%s1] sm:$0xff]
    %v28 = vld [vmem:[%s1 + $0x8] sm:$0xff]
    %v29 = vld [vmem:[%s1 + $0x10] sm:$0xff]
    %v30 = vld [vmem:[%s1 + $0x18] sm:$0xff]
    %v31 = vld [vmem:[%s1 + $0x20] sm:$0xff]
    %v32 = vld [vmem:[%s1 + $0x28] sm:$0xff]
    %v33 = vld [vmem:[%s1 + $0x30] sm:$0xff]
    %v34 = vld [vmem:[%s1 + $0x38] sm:$0xff]
    %v35 = vld [vmem:[%s1 + $0x40] sm:$0xff]
    %v36 = vld [vmem:[%s1 + $0x48] sm:$0xff]
    %v37 = vld [vmem:[%s1 + $0x50] sm:$0xff]
    %v38 = vld [vmem:[%s1 + $0x58] sm:$0xff]
    %v39 = vld [vmem:[%s1 + $0x60] sm:$0xff]
    %v40 = vld [vmem:[%s1 + $0x68] sm:$0xff]
    %v41 = vld [vmem:[%s1 + $0x70] sm:$0xff]
    %v42 = vld [vmem:[%s1 + $0x78] sm:$0xff]
    %v43 = vld [vmem:[%s0] sm:$0xff]
    %v44 = vld [vmem:[%s2] sm:$0xff]
    %v45 = vld [vmem:[%s2 + $0x8] sm:$0xff]
    %v46 = vld [vmem:[%s2 + $0x10] sm:$0xff]
    %v47 = vld [vmem:[%s2 + $0x18] sm:$0xff]
    %v48 = vld [vmem:[%s2 + $0x20] sm:$0xff]
    %v49 = vld [vmem:[%s2 + $0x28] sm:$0xff]
    %v50 = vld [vmem:[%s2 + $0x30] sm:$0xff]
    %v51 = vld [vmem:[%s2 + $0x38] sm:$0xff]
    %v52 = vld [vmem:[%s2 + $0x40] sm:$0xff]
    %v53 = vld [vmem:[%s2 + $0x48] sm:$0xff]
    %v54 = vld [vmem:[%s2 + $0x50] sm:$0xff]
    %v55 = vld [vmem:[%s2 + $0x58] sm:$0xff]
    %v56 = vld [vmem:[%s2 + $0x60] sm:$0xff]
    %v57 = vld [vmem:[%s2 + $0x68] sm:$0xff]
    %v58 = vld [vmem:[%s2 + $0x70] sm:$0xff]
    %v59 = vld [vmem:[%s2 + $0x78] sm:$0xff]
    %61 = vset.pattern.permute.xlu0 0
    %62 = vperm.xlu0 %61, %v44
    %v63 = vpop.permute.xlu0 %62
    %66 = vset.pattern.permute.xlu0 0
    %67 = vperm.xlu0 %66, %v45
    %v68 = vpop.permute.xlu0 %67
    %71 = vset.pattern.permute.xlu0 0
    %72 = vperm.xlu0 %71, %v46
    %v73 = vpop.permute.xlu0 %72
    %76 = vset.pattern.permute.xlu0 0
    %77 = vperm.xlu0 %76, %v47
    %v78 = vpop.permute.xlu0 %77
    %81 = vset.pattern.permute.xlu0 0
    %82 = vperm.xlu0 %81, %v48
    %v83 = vpop.permute.xlu0 %82
    %86 = vset.pattern.permute.xlu0 0
    %87 = vperm.xlu0 %86, %v49
    %v88 = vpop.permute.xlu0 %87
    %91 = vset.pattern.permute.xlu0 0
    %92 = vperm.xlu0 %91, %v50
    %v93 = vpop.permute.xlu0 %92
    %96 = vset.pattern.permute.xlu0 0
    %97 = vperm.xlu0 %96, %v51
    %v98 = vpop.permute.xlu0 %97
    %101 = vset.pattern.permute.xlu0 0
    %102 = vperm.xlu0 %101, %v52
    %v103 = vpop.permute.xlu0 %102
    %106 = vset.pattern.permute.xlu0 0
    %107 = vperm.xlu0 %106, %v53
    %v108 = vpop.permute.xlu0 %107
    %111 = vset.pattern.permute.xlu0 0
    %112 = vperm.xlu0 %111, %v54
    %v113 = vpop.permute.xlu0 %112
    %116 = vset.pattern.permute.xlu0 0
    %117 = vperm.xlu0 %116, %v55
    %v118 = vpop.permute.xlu0 %117
    %121 = vset.pattern.permute.xlu0 0
    %122 = vperm.xlu0 %121, %v56
    %v123 = vpop.permute.xlu0 %122
    %126 = vset.pattern.permute.xlu0 0
    %127 = vperm.xlu0 %126, %v57
    %v128 = vpop.permute.xlu0 %127
    %131 = vset.pattern.permute.xlu0 0
    %132 = vperm.xlu0 %131, %v58
    %v133 = vpop.permute.xlu0 %132
    %136 = vset.pattern.permute.xlu0 0
    %137 = vperm.xlu0 %136, %v59
    %v138 = vpop.permute.xlu0 %137
    %vm140 = vcmask 64512
    %v142 = vsel %vm140, %v27, 0
    %v145 = vsel %vm140, %v28, 0
    %v148 = vsel %vm140, %v29, 0
    %v151 = vsel %vm140, %v30, 0
    %v154 = vsel %vm140, %v31, 0
    %v157 = vsel %vm140, %v32, 0
    %v160 = vsel %vm140, %v33, 0
    %v163 = vsel %vm140, %v34, 0
    %v166 = vsel %vm140, %v35, 0
    %v169 = vsel %vm140, %v36, 0
    %v172 = vsel %vm140, %v37, 0
    %v175 = vsel %vm140, %v38, 0
    %v178 = vsel %vm140, %v39, 0
    %v181 = vsel %vm140, %v40, 0
    %v184 = vsel %vm140, %v41, 0
    %v187 = vsel %vm140, %v42, 0
    %189 = vmatprep.subr.mxu0 0.0
    %190 = vmatpush1.msra.mxu0 %v43
    %191 = vmatprep.subr.mxu0 0.0
    %192 = vmatpush1.msra.mxu0 0.0
    %193 = vmatprep.subr.mxu0 0.0
    %194 = vmatpush1.msra.mxu0 0.0
    %195 = vmatprep.subr.mxu0 0.0
    %196 = vmatpush1.msra.mxu0 0.0
    %197 = vmatprep.subr.mxu0 0.0
    %198 = vmatpush1.msra.mxu0 0.0
    %199 = vmatprep.subr.mxu0 0.0
    %200 = vmatpush1.msra.mxu0 0.0
    %201 = vmatprep.subr.mxu0 0.0
    %202 = vmatpush1.msra.mxu0 0.0
    %203 = vmatprep.subr.mxu0 0.0
    %204 = vmatpush1.msra.mxu0 0.0
    %205 = vmatprep.subr.mxu0 0.0
    %206 = vmatpush1.msra.mxu0 0.0
    %207 = vmatprep.subr.mxu0 0.0
    %208 = vmatpush1.msra.mxu0 0.0
    %209 = vmatprep.subr.mxu0 0.0
    %210 = vmatpush1.msra.mxu0 0.0
    %211 = vmatprep.subr.mxu0 0.0
    %212 = vmatpush1.msra.mxu0 0.0
    %213 = vmatprep.subr.mxu0 0.0
    %214 = vmatpush1.msra.mxu0 0.0
    %215 = vmatprep.subr.mxu0 0.0
    %216 = vmatpush1.msra.mxu0 0.0
    %217 = vmatprep.subr.mxu0 0.0
    %218 = vmatpush1.msra.mxu0 0.0
    %219 = vmatprep.subr.mxu0 0.0
    %220 = vmatpush1.msra.mxu0 0.0
    %221 = vmatprep.subr.mxu0 0.0
    %222 = vmatpush1.msra.mxu0 0.0
    %223 = vmatprep.subr.mxu0 0.0
    %224 = vmatpush1.msra.mxu0 0.0
    %225 = vmatprep.subr.mxu0 0.0
    %226 = vmatpush1.msra.mxu0 0.0
    %227 = vmatprep.subr.mxu0 0.0
    %228 = vmatpush1.msra.mxu0 0.0
    %229 = vmatprep.subr.mxu0 0.0
    %230 = vmatpush1.msra.mxu0 0.0
    %231 = vmatprep.subr.mxu0 0.0
    %232 = vmatpush1.msra.mxu0 0.0
    %233 = vmatprep.subr.mxu0 0.0
    %234 = vmatpush1.msra.mxu0 0.0
    %235 = vmatprep.subr.mxu0 0.0
    %236 = vmatpush1.msra.mxu0 0.0
    %237 = vmatprep.subr.mxu0 0.0
    %238 = vmatpush1.msra.mxu0 0.0
    %239 = vmatprep.subr.mxu0 0.0
    %240 = vmatpush1.msra.mxu0 0.0
    %241 = vmatprep.subr.mxu0 0.0
    %242 = vmatpush1.msra.mxu0 0.0
    %243 = vmatprep.subr.mxu0 0.0
    %244 = vmatpush1.msra.mxu0 0.0
    %245 = vmatprep.subr.mxu0 0.0
    %246 = vmatpush1.msra.mxu0 0.0
    %247 = vmatprep.subr.mxu0 0.0
    %248 = vmatpush1.msra.mxu0 0.0
    %249 = vmatprep.subr.mxu0 0.0
    %250 = vmatpush1.msra.mxu0 0.0
    %251 = vmatprep.subr.mxu0 0.0
    %252 = vmatpush1.msra.mxu0 0.0
    %253 = vmatprep.mubr.f32.mxu0 0.0
    %254 = vmatmul.mubr.f32.gmra.mrb[0].mxu0 %v142
    %v255 = vpop.f32.mrb[0].mxu0
    %v256 = vadd.f32 %v63, %v255
    %v257 = vpop.f32.mrb[0].mxu0
    %258 = vmatprep.mubr.f32.mxu0 0.0
    %259 = vmatmul.mubr.f32.gmra.mrb[0].mxu0 %v145
    %v260 = vpop.f32.mrb[0].mxu0
    %v261 = vadd.f32 %v68, %v260
    %v262 = vpop.f32.mrb[0].mxu0
    %263 = vmatprep.mubr.f32.mxu0 0.0
    %264 = vmatmul.mubr.f32.gmra.mrb[0].mxu0 %v148
    %v265 = vpop.f32.mrb[0].mxu0
    %v266 = vadd.f32 %v73, %v265
    %v267 = vpop.f32.mrb[0].mxu0
    %268 = vmatprep.mubr.f32.mxu0 0.0
    %269 = vmatmul.mubr.f32.gmra.mrb[0].mxu0 %v151
    %v270 = vpop.f32.mrb[0].mxu0
    %v271 = vadd.f32 %v78, %v270
    %v272 = vpop.f32.mrb[0].mxu0
    %273 = vmatprep.mubr.f32.mxu0 0.0
    %274 = vmatmul.mubr.f32.gmra.mrb[0].mxu0 %v154
    %v275 = vpop.f32.mrb[0].mxu0
    %v276 = vadd.f32 %v83, %v275
    %v277 = vpop.f32.mrb[0].mxu0
    %278 = vmatprep.mubr.f32.mxu0 0.0
    %279 = vmatmul.mubr.f32.gmra.mrb[0].mxu0 %v157
    %v280 = vpop.f32.mrb[0].mxu0
    %v281 = vadd.f32 %v88, %v280
    %v282 = vpop.f32.mrb[0].mxu0
    %283 = vmatprep.mubr.f32.mxu0 0.0
    %284 = vmatmul.mubr.f32.gmra.mrb[0].mxu0 %v160
    %v285 = vpop.f32.mrb[0].mxu0
    %v286 = vadd.f32 %v93, %v285
    %v287 = vpop.f32.mrb[0].mxu0
    %288 = vmatprep.mubr.f32.mxu0 0.0
    %289 = vmatmul.mubr.f32.gmra.mrb[0].mxu0 %v163
    %v290 = vpop.f32.mrb[0].mxu0
    %v291 = vadd.f32 %v98, %v290
    %v292 = vpop.f32.mrb[0].mxu0
    %293 = vmatprep.mubr.f32.mxu0 0.0
    %294 = vmatmul.mubr.f32.gmra.mrb[0].mxu0 %v166
    %v295 = vpop.f32.mrb[0].mxu0
    %v296 = vadd.f32 %v103, %v295
    %v297 = vpop.f32.mrb[0].mxu0
    %298 = vmatprep.mubr.f32.mxu0 0.0
    %299 = vmatmul.mubr.f32.gmra.mrb[0].mxu0 %v169
    %v300 = vpop.f32.mrb[0].mxu0
    %v301 = vadd.f32 %v108, %v300
    %v302 = vpop.f32.mrb[0].mxu0
    %303 = vmatprep.mubr.f32.mxu0 0.0
    %304 = vmatmul.mubr.f32.gmra.mrb[0].mxu0 %v172
    %v305 = vpop.f32.mrb[0].mxu0
    %v306 = vadd.f32 %v113, %v305
    %v307 = vpop.f32.mrb[0].mxu0
    %308 = vmatprep.mubr.f32.mxu0 0.0
    %309 = vmatmul.mubr.f32.gmra.mrb[0].mxu0 %v175
    %v310 = vpop.f32.mrb[0].mxu0
    %v311 = vadd.f32 %v118, %v310
    %v312 = vpop.f32.mrb[0].mxu0
    %313 = vmatprep.mubr.f32.mxu0 0.0
    %314 = vmatmul.mubr.f32.gmra.mrb[0].mxu0 %v178
    %v315 = vpop.f32.mrb[0].mxu0
    %v316 = vadd.f32 %v123, %v315
    %v317 = vpop.f32.mrb[0].mxu0
    %318 = vmatprep.mubr.f32.mxu0 0.0
    %319 = vmatmul.mubr.f32.gmra.mrb[0].mxu0 %v181
    %v320 = vpop.f32.mrb[0].mxu0
    %v321 = vadd.f32 %v128, %v320
    %v322 = vpop.f32.mrb[0].mxu0
    %323 = vmatprep.mubr.f32.mxu0 0.0
    %324 = vmatmul.mubr.f32.gmra.mrb[0].mxu0 %v184
    %v325 = vpop.f32.mrb[0].mxu0
    %v326 = vadd.f32 %v133, %v325
    %v327 = vpop.f32.mrb[0].mxu0
    %328 = vmatprep.mubr.f32.mxu0 0.0
    %329 = vmatmul.mubr.f32.gmra.mrb[0].mxu0 %v187
    %v330 = vpop.f32.mrb[0].mxu0
    %v331 = vadd.f32 %v138, %v330
    %v332 = vpop.f32.mrb[0].mxu0
    %333 = vdwg.mxu0
    %vm334 = vcmp.ge.f32.partialorder %v256, 0.0
    %vm335 = vcmp.ge.f32.partialorder %v261, 0.0
    %vm336 = vcmp.ge.f32.partialorder %v266, 0.0
    %vm337 = vcmp.ge.f32.partialorder %v271, 0.0
    %vm338 = vcmp.ge.f32.partialorder %v276, 0.0
    %vm339 = vcmp.ge.f32.partialorder %v281, 0.0
    %vm340 = vcmp.ge.f32.partialorder %v286, 0.0
    %vm341 = vcmp.ge.f32.partialorder %v291, 0.0
    %vm342 = vcmp.ge.f32.partialorder %v296, 0.0
    %vm343 = vcmp.ge.f32.partialorder %v301, 0.0
    %vm344 = vcmp.ge.f32.partialorder %v306, 0.0
    %vm345 = vcmp.ge.f32.partialorder %v311, 0.0
    %vm346 = vcmp.ge.f32.partialorder %v316, 0.0
    %vm347 = vcmp.ge.f32.partialorder %v321, 0.0
    %vm348 = vcmp.ge.f32.partialorder %v326, 0.0
    %vm349 = vcmp.ge.f32.partialorder %v331, 0.0
    %v350 = vmul.f32 %v256, 0.2
    %v351 = vmul.f32 %v261, 0.2
    %v352 = vmul.f32 %v266, 0.2
    %v353 = vmul.f32 %v271, 0.2
    %v354 = vmul.f32 %v276, 0.2
    %v355 = vmul.f32 %v281, 0.2
    %v356 = vmul.f32 %v286, 0.2
    %v357 = vmul.f32 %v291, 0.2
    %v358 = vmul.f32 %v296, 0.2
    %v359 = vmul.f32 %v301, 0.2
    %v360 = vmul.f32 %v306, 0.2
    %v361 = vmul.f32 %v311, 0.2
    %v362 = vmul.f32 %v316, 0.2
    %v363 = vmul.f32 %v321, 0.2
    %v364 = vmul.f32 %v326, 0.2
    %v365 = vmul.f32 %v331, 0.2
    %v366 = vsel %vm334, %v256, %v350
    %v367 = vsel %vm335, %v261, %v351
    %v368 = vsel %vm336, %v266, %v352
    %v369 = vsel %vm337, %v271, %v353
    %v370 = vsel %vm338, %v276, %v354
    %v371 = vsel %vm339, %v281, %v355
    %v372 = vsel %vm340, %v286, %v356
    %v373 = vsel %vm341, %v291, %v357
    %v374 = vsel %vm342, %v296, %v358
    %v375 = vsel %vm343, %v301, %v359
    %v376 = vsel %vm344, %v306, %v360
    %v377 = vsel %vm345, %v311, %v361
    %v378 = vsel %vm346, %v316, %v362
    %v379 = vsel %vm347, %v321, %v363
    %v380 = vsel %vm348, %v326, %v364
    %v381 = vsel %vm349, %v331, %v365
    %v382 = vld [vmem:[%s3] sm:$0xff]
    %v383 = vld [vmem:[%s3 + $0x8] sm:$0xff]
    %v384 = vld [vmem:[%s3 + $0x10] sm:$0xff]
    %v385 = vld [vmem:[%s3 + $0x18] sm:$0xff]
    %v386 = vld [vmem:[%s3 + $0x20] sm:$0xff]
    %v387 = vld [vmem:[%s3 + $0x28] sm:$0xff]
    %v388 = vld [vmem:[%s3 + $0x30] sm:$0xff]
    %v389 = vld [vmem:[%s3 + $0x38] sm:$0xff]
    %v390 = vld [vmem:[%s3 + $0x40] sm:$0xff]
    %v391 = vld [vmem:[%s3 + $0x48] sm:$0xff]
    %v392 = vld [vmem:[%s3 + $0x50] sm:$0xff]
    %v393 = vld [vmem:[%s3 + $0x58] sm:$0xff]
    %v394 = vld [vmem:[%s3 + $0x60] sm:$0xff]
    %v395 = vld [vmem:[%s3 + $0x68] sm:$0xff]
    %v396 = vld [vmem:[%s3 + $0x70] sm:$0xff]
    %v397 = vld [vmem:[%s3 + $0x78] sm:$0xff]
    %v398 = vld [vmem:[%s4] sm:$0xff]
    %v399 = vld [vmem:[%s4 + $0x8] sm:$0xff]
    %v400 = vld [vmem:[%s4 + $0x10] sm:$0xff]
    %v401 = vld [vmem:[%s4 + $0x18] sm:$0xff]
    %v402 = vld [vmem:[%s4 + $0x20] sm:$0xff]
    %v403 = vld [vmem:[%s4 + $0x28] sm:$0xff]
    %v404 = vld [vmem:[%s4 + $0x30] sm:$0xff]
    %v405 = vld [vmem:[%s4 + $0x38] sm:$0xff]
    %v406 = vld [vmem:[%s4 + $0x40] sm:$0xff]
    %v407 = vld [vmem:[%s4 + $0x48] sm:$0xff]
    %v408 = vld [vmem:[%s4 + $0x50] sm:$0xff]
    %v409 = vld [vmem:[%s4 + $0x58] sm:$0xff]
    %v410 = vld [vmem:[%s4 + $0x60] sm:$0xff]
    %v411 = vld [vmem:[%s4 + $0x68] sm:$0xff]
    %v412 = vld [vmem:[%s4 + $0x70] sm:$0xff]
    %v413 = vld [vmem:[%s4 + $0x78] sm:$0xff]
    %415 = vset.pattern.permute.xlu0 0
    %416 = vperm.xlu0 %415, %v398
    %v417 = vpop.permute.xlu0 %416
    %420 = vset.pattern.permute.xlu0 0
    %421 = vperm.xlu0 %420, %v399
    %v422 = vpop.permute.xlu0 %421
    %425 = vset.pattern.permute.xlu0 0
    %426 = vperm.xlu0 %425, %v400
    %v427 = vpop.permute.xlu0 %426
    %430 = vset.pattern.permute.xlu0 0
    %431 = vperm.xlu0 %430, %v401
    %v432 = vpop.permute.xlu0 %431
    %435 = vset.pattern.permute.xlu0 0
    %436 = vperm.xlu0 %435, %v402
    %v437 = vpop.permute.xlu0 %436
    %440 = vset.pattern.permute.xlu0 0
    %441 = vperm.xlu0 %440, %v403
    %v442 = vpop.permute.xlu0 %441
    %445 = vset.pattern.permute.xlu0 0
    %446 = vperm.xlu0 %445, %v404
    %v447 = vpop.permute.xlu0 %446
    %450 = vset.pattern.permute.xlu0 0
    %451 = vperm.xlu0 %450, %v405
    %v452 = vpop.permute.xlu0 %451
    %455 = vset.pattern.permute.xlu0 0
    %456 = vperm.xlu0 %455, %v406
    %v457 = vpop.permute.xlu0 %456
    %460 = vset.pattern.permute.xlu0 0
    %461 = vperm.xlu0 %460, %v407
    %v462 = vpop.permute.xlu0 %461
    %465 = vset.pattern.permute.xlu0 0
    %466 = vperm.xlu0 %465, %v408
    %v467 = vpop.permute.xlu0 %466
    %470 = vset.pattern.permute.xlu0 0
    %471 = vperm.xlu0 %470, %v409
    %v472 = vpop.permute.xlu0 %471
    %475 = vset.pattern.permute.xlu0 0
    %476 = vperm.xlu0 %475, %v410
    %v477 = vpop.permute.xlu0 %476
    %480 = vset.pattern.permute.xlu0 0
    %481 = vperm.xlu0 %480, %v411
    %v482 = vpop.permute.xlu0 %481
    %485 = vset.pattern.permute.xlu0 0
    %486 = vperm.xlu0 %485, %v412
    %v487 = vpop.permute.xlu0 %486
    %490 = vset.pattern.permute.xlu0 0
    %491 = vperm.xlu0 %490, %v413
    %v492 = vpop.permute.xlu0 %491
    %494 = vmatprep.subr.mxu0 0.0
    %495 = vmatpush1.msra.mxu0 %v366
    %496 = vmatprep.subr.mxu0 0.0
    %497 = vmatpush1.msra.mxu0 %v367
    %498 = vmatprep.subr.mxu0 0.0
    %499 = vmatpush1.msra.mxu0 %v368
    %500 = vmatprep.subr.mxu0 0.0
    %501 = vmatpush1.msra.mxu0 %v369
    %502 = vmatprep.subr.mxu0 0.0
    %503 = vmatpush1.msra.mxu0 %v370
    %504 = vmatprep.subr.mxu0 0.0
    %505 = vmatpush1.msra.mxu0 %v371
    %506 = vmatprep.subr.mxu0 0.0
    %507 = vmatpush1.msra.mxu0 %v372
    %508 = vmatprep.subr.mxu0 0.0
    %509 = vmatpush1.msra.mxu0 %v373
    %510 = vmatprep.subr.mxu0 0.0
    %511 = vmatpush1.msra.mxu0 %v374
    %512 = vmatprep.subr.mxu0 0.0
    %513 = vmatpush1.msra.mxu0 %v375
    %514 = vmatprep.subr.mxu0 0.0
    %515 = vmatpush1.msra.mxu0 %v376
    %516 = vmatprep.subr.mxu0 0.0
    %517 = vmatpush1.msra.mxu0 %v377
    %518 = vmatprep.subr.mxu0 0.0
    %519 = vmatpush1.msra.mxu0 %v378
    %520 = vmatprep.subr.mxu0 0.0
    %521 = vmatpush1.msra.mxu0 %v379
    %522 = vmatprep.subr.mxu0 0.0
    %523 = vmatpush1.msra.mxu0 %v380
    %524 = vmatprep.subr.mxu0 0.0
    %525 = vmatpush1.msra.mxu0 %v381
    %526 = vmatprep.subr.mxu0 0.0
    %527 = vmatpush1.msra.mxu0 0.0
    %528 = vmatprep.subr.mxu0 0.0
    %529 = vmatpush1.msra.mxu0 0.0
    %530 = vmatprep.subr.mxu0 0.0
    %531 = vmatpush1.msra.mxu0 0.0
    %532 = vmatprep.subr.mxu0 0.0
    %533 = vmatpush1.msra.mxu0 0.0
    %534 = vmatprep.subr.mxu0 0.0
    %535 = vmatpush1.msra.mxu0 0.0
    %536 = vmatprep.subr.mxu0 0.0
    %537 = vmatpush1.msra.mxu0 0.0
    %538 = vmatprep.subr.mxu0 0.0
    %539 = vmatpush1.msra.mxu0 0.0
    %540 = vmatprep.subr.mxu0 0.0
    %541 = vmatpush1.msra.mxu0 0.0
    %542 = vmatprep.subr.mxu0 0.0
    %543 = vmatpush1.msra.mxu0 0.0
    %544 = vmatprep.subr.mxu0 0.0
    %545 = vmatpush1.msra.mxu0 0.0
    %546 = vmatprep.subr.mxu0 0.0
    %547 = vmatpush1.msra.mxu0 0.0
    %548 = vmatprep.subr.mxu0 0.0
    %549 = vmatpush1.msra.mxu0 0.0
    %550 = vmatprep.subr.mxu0 0.0
    %551 = vmatpush1.msra.mxu0 0.0
    %552 = vmatprep.subr.mxu0 0.0
    %553 = vmatpush1.msra.mxu0 0.0
    %554 = vmatprep.subr.mxu0 0.0
    %555 = vmatpush1.msra.mxu0 0.0
    %556 = vmatprep.subr.mxu0 0.0
    %557 = vmatpush1.msra.mxu0 0.0
    %558 = vmatprep.mubr.f32.mxu0 0.0
    %559 = vmatmul.mubr.f32.gmra.mrb[0].mxu0 %v382
    %v560 = vpop.f32.mrb[0].mxu0
    %v561 = vadd.f32 %v417, %v560
    %v562 = vpop.f32.mrb[0].mxu0
    %563 = vmatprep.mubr.f32.mxu0 0.0
    %564 = vmatmul.mubr.f32.gmra.mrb[0].mxu0 %v383
    %v565 = vpop.f32.mrb[0].mxu0
    %v566 = vadd.f32 %v422, %v565
    %v567 = vpop.f32.mrb[0].mxu0
    %568 = vmatprep.mubr.f32.mxu0 0.0
    %569 = vmatmul.mubr.f32.gmra.mrb[0].mxu0 %v384
    %v570 = vpop.f32.mrb[0].mxu0
    %v571 = vadd.f32 %v427, %v570
    %v572 = vpop.f32.mrb[0].mxu0
    %573 = vmatprep.mubr.f32.mxu0 0.0
    %574 = vmatmul.mubr.f32.gmra.mrb[0].mxu0 %v385
    %v575 = vpop.f32.mrb[0].mxu0
    %v576 = vadd.f32 %v432, %v575
    %v577 = vpop.f32.mrb[0].mxu0
    %578 = vmatprep.mubr.f32.mxu0 0.0
    %579 = vmatmul.mubr.f32.gmra.mrb[0].mxu0 %v386
    %v580 = vpop.f32.mrb[0].mxu0
    %v581 = vadd.f32 %v437, %v580
    %v582 = vpop.f32.mrb[0].mxu0
    %583 = vmatprep.mubr.f32.mxu0 0.0
    %584 = vmatmul.mubr.f32.gmra.mrb[0].mxu0 %v387
    %v585 = vpop.f32.mrb[0].mxu0
    %v586 = vadd.f32 %v442, %v585
    %v587 = vpop.f32.mrb[0].mxu0
    %588 = vmatprep.mubr.f32.mxu0 0.0
    %589 = vmatmul.mubr.f32.gmra.mrb[0].mxu0 %v388
    %v590 = vpop.f32.mrb[0].mxu0
    %v591 = vadd.f32 %v447, %v590
    %v592 = vpop.f32.mrb[0].mxu0
    %593 = vmatprep.mubr.f32.mxu0 0.0
    %594 = vmatmul.mubr.f32.gmra.mrb[0].mxu0 %v389
    %v595 = vpop.f32.mrb[0].mxu0
    %v596 = vadd.f32 %v452, %v595
    %v597 = vpop.f32.mrb[0].mxu0
    %598 = vmatprep.mubr.f32.mxu0 0.0
    %599 = vmatmul.mubr.f32.gmra.mrb[0].mxu0 %v390
    %v600 = vpop.f32.mrb[0].mxu0
    %v601 = vadd.f32 %v457, %v600
    %v602 = vpop.f32.mrb[0].mxu0
    %603 = vmatprep.mubr.f32.mxu0 0.0
    %604 = vmatmul.mubr.f32.gmra.mrb[0].mxu0 %v391
    %v605 = vpop.f32.mrb[0].mxu0
    %v606 = vadd.f32 %v462, %v605
    %v607 = vpop.f32.mrb[0].mxu0
    %608 = vmatprep.mubr.f32.mxu0 0.0
    %609 = vmatmul.mubr.f32.gmra.mrb[0].mxu0 %v392
    %v610 = vpop.f32.mrb[0].mxu0
    %v611 = vadd.f32 %v467, %v610
    %v612 = vpop.f32.mrb[0].mxu0
    %613 = vmatprep.mubr.f32.mxu0 0.0
    %614 = vmatmul.mubr.f32.gmra.mrb[0].mxu0 %v393
    %v615 = vpop.f32.mrb[0].mxu0
    %v616 = vadd.f32 %v472, %v615
    %v617 = vpop.f32.mrb[0].mxu0
    %618 = vmatprep.mubr.f32.mxu0 0.0
    %619 = vmatmul.mubr.f32.gmra.mrb[0].mxu0 %v394
    %v620 = vpop.f32.mrb[0].mxu0
    %v621 = vadd.f32 %v477, %v620
    %v622 = vpop.f32.mrb[0].mxu0
    %623 = vmatprep.mubr.f32.mxu0 0.0
    %624 = vmatmul.mubr.f32.gmra.mrb[0].mxu0 %v395
    %v625 = vpop.f32.mrb[0].mxu0
    %v626 = vadd.f32 %v482, %v625
    %v627 = vpop.f32.mrb[0].mxu0
    %628 = vmatprep.mubr.f32.mxu0 0.0
    %629 = vmatmul.mubr.f32.gmra.mrb[0].mxu0 %v396
    %v630 = vpop.f32.mrb[0].mxu0
    %v631 = vadd.f32 %v487, %v630
    %v632 = vpop.f32.mrb[0].mxu0
    %633 = vmatprep.mubr.f32.mxu0 0.0
    %634 = vmatmul.mubr.f32.gmra.mrb[0].mxu0 %v397
    %v635 = vpop.f32.mrb[0].mxu0
    %v636 = vadd.f32 %v492, %v635
    %v637 = vpop.f32.mrb[0].mxu0
    %638 = vdwg.mxu0
    %vm639 = vcmp.ge.f32.partialorder %v561, 0.0
    %vm640 = vcmp.ge.f32.partialorder %v566, 0.0
    %vm641 = vcmp.ge.f32.partialorder %v571, 0.0
    %vm642 = vcmp.ge.f32.partialorder %v576, 0.0
    %vm643 = vcmp.ge.f32.partialorder %v581, 0.0
    %vm644 = vcmp.ge.f32.partialorder %v586, 0.0
    %vm645 = vcmp.ge.f32.partialorder %v591, 0.0
    %vm646 = vcmp.ge.f32.partialorder %v596, 0.0
    %vm647 = vcmp.ge.f32.partialorder %v601, 0.0
    %vm648 = vcmp.ge.f32.partialorder %v606, 0.0
    %vm649 = vcmp.ge.f32.partialorder %v611, 0.0
    %vm650 = vcmp.ge.f32.partialorder %v616, 0.0
    %vm651 = vcmp.ge.f32.partialorder %v621, 0.0
    %vm652 = vcmp.ge.f32.partialorder %v626, 0.0
    %vm653 = vcmp.ge.f32.partialorder %v631, 0.0
    %vm654 = vcmp.ge.f32.partialorder %v636, 0.0
    %v655 = vmul.f32 %v561, 0.2
    %v656 = vmul.f32 %v566, 0.2
    %v657 = vmul.f32 %v571, 0.2
    %v658 = vmul.f32 %v576, 0.2
    %v659 = vmul.f32 %v581, 0.2
    %v660 = vmul.f32 %v586, 0.2
    %v661 = vmul.f32 %v591, 0.2
    %v662 = vmul.f32 %v596, 0.2
    %v663 = vmul.f32 %v601, 0.2
    %v664 = vmul.f32 %v606, 0.2
    %v665 = vmul.f32 %v611, 0.2
    %v666 = vmul.f32 %v616, 0.2
    %v667 = vmul.f32 %v621, 0.2
    %v668 = vmul.f32 %v626, 0.2
    %v669 = vmul.f32 %v631, 0.2
    %v670 = vmul.f32 %v636, 0.2
    %v671 = vsel %vm639, %v561, %v655
    %v672 = vsel %vm640, %v566, %v656
    %v673 = vsel %vm641, %v571, %v657
    %v674 = vsel %vm642, %v576, %v658
    %v675 = vsel %vm643, %v581, %v659
    %v676 = vsel %vm644, %v586, %v660
    %v677 = vsel %vm645, %v591, %v661
    %v678 = vsel %vm646, %v596, %v662
    %v679 = vsel %vm647, %v601, %v663
    %v680 = vsel %vm648, %v606, %v664
    %v681 = vsel %vm649, %v611, %v665
    %v682 = vsel %vm650, %v616, %v666
    %v683 = vsel %vm651, %v621, %v667
    %v684 = vsel %vm652, %v626, %v668
    %v685 = vsel %vm653, %v631, %v669
    %v686 = vsel %vm654, %v636, %v670
    %v687 = vld [vmem:[%s5] sm:$0xff]
    %v688 = vld [vmem:[%s6] sm:$0xff]
    %690 = vset.pattern.permute.xlu0 0
    %691 = vperm.xlu0 %690, %v688
    %v692 = vpop.permute.xlu0 %691
    %694 = vmatprep.subr.mxu0 0.0
    %695 = vmatpush1.msra.mxu0 %v671
    %696 = vmatprep.subr.mxu0 0.0
    %697 = vmatpush1.msra.mxu0 %v672
    %698 = vmatprep.subr.mxu0 0.0
    %699 = vmatpush1.msra.mxu0 %v673
    %700 = vmatprep.subr.mxu0 0.0
    %701 = vmatpush1.msra.mxu0 %v674
    %702 = vmatprep.subr.mxu0 0.0
    %703 = vmatpush1.msra.mxu0 %v675
    %704 = vmatprep.subr.mxu0 0.0
    %705 = vmatpush1.msra.mxu0 %v676
    %706 = vmatprep.subr.mxu0 0.0
    %707 = vmatpush1.msra.mxu0 %v677
    %708 = vmatprep.subr.mxu0 0.0
    %709 = vmatpush1.msra.mxu0 %v678
    %710 = vmatprep.subr.mxu0 0.0
    %711 = vmatpush1.msra.mxu0 %v679
    %712 = vmatprep.subr.mxu0 0.0
    %713 = vmatpush1.msra.mxu0 %v680
    %714 = vmatprep.subr.mxu0 0.0
    %715 = vmatpush1.msra.mxu0 %v681
    %716 = vmatprep.subr.mxu0 0.0
    %717 = vmatpush1.msra.mxu0 %v682
    %718 = vmatprep.subr.mxu0 0.0
    %719 = vmatpush1.msra.mxu0 %v683
    %720 = vmatprep.subr.mxu0 0.0
    %721 = vmatpush1.msra.mxu0 %v684
    %722 = vmatprep.subr.mxu0 0.0
    %723 = vmatpush1.msra.mxu0 %v685
    %724 = vmatprep.subr.mxu0 0.0
    %725 = vmatpush1.msra.mxu0 %v686
    %726 = vmatprep.subr.mxu0 0.0
    %727 = vmatpush1.msra.mxu0 0.0
    %728 = vmatprep.subr.mxu0 0.0
    %729 = vmatpush1.msra.mxu0 0.0
    %730 = vmatprep.subr.mxu0 0.0
    %731 = vmatpush1.msra.mxu0 0.0
    %732 = vmatprep.subr.mxu0 0.0
    %733 = vmatpush1.msra.mxu0 0.0
    %734 = vmatprep.subr.mxu0 0.0
    %735 = vmatpush1.msra.mxu0 0.0
    %736 = vmatprep.subr.mxu0 0.0
    %737 = vmatpush1.msra.mxu0 0.0
    %738 = vmatprep.subr.mxu0 0.0
    %739 = vmatpush1.msra.mxu0 0.0
    %740 = vmatprep.subr.mxu0 0.0
    %741 = vmatpush1.msra.mxu0 0.0
    %742 = vmatprep.subr.mxu0 0.0
    %743 = vmatpush1.msra.mxu0 0.0
    %744 = vmatprep.subr.mxu0 0.0
    %745 = vmatpush1.msra.mxu0 0.0
    %746 = vmatprep.subr.mxu0 0.0
    %747 = vmatpush1.msra.mxu0 0.0
    %748 = vmatprep.subr.mxu0 0.0
    %749 = vmatpush1.msra.mxu0 0.0
    %750 = vmatprep.subr.mxu0 0.0
    %751 = vmatpush1.msra.mxu0 0.0
    %752 = vmatprep.subr.mxu0 0.0
    %753 = vmatpush1.msra.mxu0 0.0
    %754 = vmatprep.subr.mxu0 0.0
    %755 = vmatpush1.msra.mxu0 0.0
    %756 = vmatprep.subr.mxu0 0.0
    %757 = vmatpush1.msra.mxu0 0.0
    %758 = vmatprep.mubr.f32.mxu0 0.0
    %759 = vmatmul.mubr.f32.gmra.mrb[0].mxu0 %v687
    %v760 = vpop.f32.mrb[0].mxu0
    %v761 = vadd.f32 %v692, %v760
    %v762 = vpop.f32.mrb[0].mxu0
    %763 = vdwg.mxu0
    %vm764 = vcmp.ge.f32.partialorder %v761, 0.0
    %v765 = vmul.f32 %v761, 0.2
    %v766 = vsel %vm764, %v761, %v765
    %767 = vst [vmem:[#allocation2] sm:$0xff] %v766
    // Predicated region
    $region30: #{tpu_custom_call.1} parent=1 // pred_check
      _
    $region31: #{tpu_custom_call.1} parent=1 // pred_check_branch
      %769 = sbr.rel (0) target = $region33
    $region32: #{tpu_custom_call.1} parent=1 // pred_region
      %s771 = ssub.s32 128, 128
      %772 = vsyncadd [#allocation3], %s771
      %s774 = sshll.u32 [#allocation2], 4
      %s775 = int_to_ptr.vmem [resolvable:$true] %s774
      %777 = dma.vmem_to_hbm [thread:$0]  %s775, 128, %s7, [#allocation3]
    $region33: #{tpu_custom_call.1} parent=1 // pred_fallthru
      _
    // Predicated region
    $region34: #{tpu_custom_call.1} parent=1 // pred_check
      _
    $region35: #{tpu_custom_call.1} parent=1 // pred_check_branch
      %779 = sbr.rel (0) target = $region37
    $region36: #{tpu_custom_call.1} parent=1 // pred_region
      %780 = dma.done [#allocation3], 128
    $region37: #{tpu_custom_call.1} parent=1 // pred_fallthru
      _
    %781 = vsyncpa [#allocation3], 1

</llo_original>
